<compile_context>
chip_gen: v7x
topology: tpu7x:2x2x1
jax: 0.10.0
libtpu: 0.0.40
codegen_flags: <defaults>
</compile_context>

<pallas_src>
import numpy as np
import jax
import jax.numpy as jnp
from jax import lax
from jax.experimental import pallas as pl
from jax.experimental.pallas import tpu as pltpu


# --------------------------------------------------------------------------
# Host-side construction of the fused (blur o reflect-pad o nearest-upsample)
# matrices.  Done in float64 numpy so there is no device precision concern.
# --------------------------------------------------------------------------
def _gaussian_kernel1d_np(kernel_size: int, sigma: float) -> np.ndarray:
    # kornia get_gaussian_kernel1d: x = arange(ks) - ks // 2  (ks is odd)
    x = np.arange(kernel_size, dtype=np.float64) - (kernel_size // 2)
    g = np.exp(-(x * x) / (2.0 * sigma * sigma))
    return g / g.sum()


def _fused_matrix_np(out_len: int, in_len: int, k1: np.ndarray,
                     pad: int) -> np.ndarray:
    """M of shape (out_len, in_len) applying, along one axis:
       nearest-upsample(in_len -> out_len) -> reflect-pad(pad) -> 1D blur."""
    ks = k1.shape[0]
    n_pad = out_len + 2 * pad                       # padded length (ks-1 == 2*pad)

    # banded blur matrix: band[i, i + t] = k1[t]
    rows = np.arange(out_len)[:, None]
    cols = np.arange(n_pad)[None, :]
    d = cols - rows
    band = np.where((d >= 0) & (d < ks), k1[np.clip(d, 0, ks - 1)], 0.0)

    # padded index j -> upsampled index u (reflect, matches ReflectionPad2d /
    # jnp.pad(mode='reflect'); requires pad <= out_len - 1)
    j = np.arange(n_pad)
    u = j - pad
    u = np.where(u < 0, -u, u)
    u = np.where(u >= out_len, 2 * (out_len - 1) - u, u)

    # upsampled index u -> source index s (torch F.interpolate mode='nearest')
    s = (u * in_len) // out_len

    # one-hot selection matrix == reflect-pad matrix @ nearest-upsample matrix
    sel = (s[:, None] == np.arange(in_len)[None, :]).astype(np.float64)
    return (band @ sel).astype(np.float32)


def _pick_block_batch(batch: int, h_out: int, w_lanes: int,
                      h_in: int, w_in: int) -> int:
    """Images per grid step: amortize per-step overhead, keep >=2 grid steps
    when batch >= 2 (v7x: 2 TensorCores), and cap the double-buffered
    per-step VMEM footprint (safe for v5e's 16 MiB default scoped VMEM)."""
    budget = 6 * 1024 * 1024                       # bytes for x + out blocks
    per_image = (h_out * w_lanes + h_in * w_in) * 4 * 2   # f32, double-buffered
    cap = max(1, budget // per_image)
    target = min(8, cap, max(1, batch // 2))
    nb = 1
    for d in range(1, batch + 1):                  # largest divisor <= target
        if batch % d == 0 and d <= target:
            nb = d
    return nb


# --------------------------------------------------------------------------
# Pallas kernel: out[i] = A @ x[i] @ B  on the MXU, unrolled over the small
# per-block batch.  All operands are tiny (tens of KB) except the output.
# --------------------------------------------------------------------------
def _blur_kernel(a_ref, x_ref, b_ref, o_ref):
    # a_ref: (H, h_in)        fused row   (blur o pad o upsample) matrix
    # x_ref: (nb, h_in, w_in) raw patch scores (channel dim squeezed)
    # b_ref: (w_in, Wp)       fused column matrix, transposed, lane-padded
    # o_ref: (nb, H, Wp)      blurred, upsampled output (lane-dense stores)
    a = a_ref[...]
    bm = b_ref[...]
    for i in range(x_ref.shape[0]):                # static unroll, nb <= 8
        tmp = jnp.dot(a, x_ref[i], preferred_element_type=jnp.float32)
        o_ref[i] = jnp.dot(tmp, bm,
                           preferred_element_type=jnp.float32).astype(o_ref.dtype)


def _blur_pallas(a_mat: jnp.ndarray, x: jnp.ndarray, b_mat: jnp.ndarray,
                 nb: int) -> jnp.ndarray:
    B, C, h_in, w_in = x.shape
    assert C == 1, "GaussianBlur2d is instantiated with channels=1"
    H, a_k = a_mat.shape
    b_k, Wp = b_mat.shape
    assert a_k == h_in and b_k == w_in and B % nb == 0

    return pl.pallas_call(
        _blur_kernel,
        out_shape=jax.ShapeDtypeStruct((B, C, H, Wp), jnp.float32),
        grid_spec=pltpu.PrefetchScalarGridSpec(
            num_scalar_prefetch=0,
            grid=(B // nb,),
            in_specs=[
                # constant index_maps -> the small fused matrices are DMA'd
                # once and stay resident across the batch grid axis
                pl.BlockSpec((H, h_in), lambda i: (0, 0)),
                # channel dim squeezed -> kernel sees (nb, h_in, w_in)
                pl.BlockSpec((nb, None, h_in, w_in), lambda i: (i, 0, 0, 0)),
                pl.BlockSpec((w_in, Wp), lambda i: (0, 0)),
            ],
            out_specs=pl.BlockSpec((nb, None, H, Wp), lambda i: (i, 0, 0, 0)),
        ),
        compiler_params=pltpu.CompilerParams(
            dimension_semantics=("parallel",)),
    )(a_mat, x, b_mat)


# --------------------------------------------------------------------------
# Public wrapper: JAX/Pallas equivalent of AnomalyMapGenerator.forward
# (NCHW layout, C == 1).
# --------------------------------------------------------------------------
def anomaly_map_generator(patch_scores: jnp.ndarray,
                          image_size=None,
                          sigma: int = 4) -> jnp.ndarray:
    kernel_size = 2 * int(4.0 * sigma + 0.5) + 1      # 33 for sigma=4
    pad = (kernel_size - 1) // 2                      # 16
    k1 = _gaussian_kernel1d_np(kernel_size, float(sigma))

    b, c, h_in, w_in = patch_scores.shape
    assert c == 1, "AnomalyMapGenerator blur is built with channels=1"

    if image_size is None:
        h_out, w_out = h_in, w_in
    else:
        h_out, w_out = int(image_size[0]), int(image_size[1])

    # ReflectionPad2d (and jnp reflect) require pad <= dim - 1
    assert h_out > pad and w_out > pad, (
        f"reflect padding {pad} requires the (upsampled) map to be at least "
        f"{pad + 1} in each spatial dim, got ({h_out}, {w_out})")

    # Fused matrices: upsample + reflect pad + separable blur per axis.
    a_mat = jnp.asarray(_fused_matrix_np(h_out, h_in, k1, pad))   # (H, h_in)
    b_full = _fused_matrix_np(w_out, w_in, k1, pad).T             # (w_in, W)

    # Pad output width to a multiple of 128 -> lane-dense output stores.
    w_lanes = ((w_out + 127) // 128) * 128
    b_np = np.zeros((w_in, w_lanes), dtype=np.float32)
    b_np[:, :w_out] = b_full
    b_mat = jnp.asarray(b_np)

    x = patch_scores.astype(jnp.float32)
    nb = _pick_block_batch(b, h_out, w_lanes, h_in, w_in)

    out = _blur_pallas(a_mat, x, b_mat, nb)           # (B, 1, H, w_lanes)
    if w_lanes != w_out:
        out = out[:, :, :, :w_out]
    return out


# --------------------------------------------------------------------------
# Self-test against a pure-JAX dense-conv reference.
# --------------------------------------------------------------------------
if __name__ == "__main__":
    key = jax.random.PRNGKey(0)
    sigma = 4
    ks = 2 * int(4.0 * sigma + 0.5) + 1
    pad = (ks - 1) // 2
    k1_j = jnp.asarray(_gaussian_kernel1d_np(ks, float(sigma)), dtype=jnp.float32)
    k2d = jnp.outer(k1_j, k1_j)[None, None]           # (1, 1, 33, 33)

    def reference(x, image_size):
        h_in, w_in = x.shape[2], x.shape[3]
        hi = (jnp.arange(image_size[0]) * h_in) // image_size[0]
        wi = (jnp.arange(image_size[1]) * w_in) // image_size[1]
        x_up = x[:, :, hi, :][:, :, :, wi]
        x_pad = jnp.pad(x_up, ((0, 0), (0, 0), (pad, pad), (pad, pad)),
                        mode="reflect")
        return lax.conv_general_dilated(
            x_pad, k2d, window_strides=(1, 1), padding="VALID",
            dimension_numbers=("NCHW", "OIHW", "NCHW"),
            precision=lax.Precision.HIGHEST)

    for (bsz, h_in, w_in, image_size) in [(2, 16, 16, (32, 32)),
                                          (4, 16, 16, (64, 64))]:
        key, sub = jax.random.split(key)
        patch_scores = jax.random.uniform(sub, (bsz, 1, h_in, w_in),
                                          dtype=jnp.float32)
        out = anomaly_map_generator(patch_scores, image_size=image_size,
                                    sigma=sigma)
        out = jax.block_until_ready(out)
        assert out.shape == (bsz, 1, image_size[0], image_size[1])
        assert out.dtype == jnp.float32
        ref = reference(patch_scores, image_size)
        err = float(jnp.max(jnp.abs(out - ref)))
        assert jnp.allclose(out, ref, atol=1e-3, rtol=1e-3), \
            f"max abs err {err}"

    print("KERNEL_OK")
</pallas_src>

<mosaic_0001>
module attributes {stable_mosaic.version = 11 : i64} {
  func.func @_blur_kernel(%arg0: i32, %arg1: memref<32x16xf32, #tpu.memory_space<vmem>>, %arg2: memref<1x1x16x16xf32, #tpu.memory_space<vmem>>, %arg3: memref<16x128xf32, #tpu.memory_space<vmem>>, %arg4: memref<1x1x32x128xf32, #tpu.memory_space<vmem>>) attributes {dimension_semantics = [#tpu.dimension_semantics<parallel>], iteration_bounds = array<i64: 2>, scalar_prefetch = 0 : i64, scratch_operands = 0 : i64, tpu.core_type = #tpu.core_type<tc>, window_params = [{pipeline_mode = #tpu.pipeline_mode<synchronous>, transform_indices = @transform_0, window_bounds = array<i64: 32, 16>}, {transform_indices = @transform_1, window_bounds = array<i64: 1, 1, 16, 16>}, {pipeline_mode = #tpu.pipeline_mode<synchronous>, transform_indices = @transform_2, window_bounds = array<i64: 16, 128>}, {transform_indices = @transform_3, window_bounds = array<i64: 1, 1, 32, 128>}]} {
    %c0 = arith.constant 0 : index
    %c0_0 = arith.constant 0 : index
    %0 = vector.load %arg1[%c0, %c0_0] : memref<32x16xf32, #tpu.memory_space<vmem>>, vector<32x16xf32>
    %c0_1 = arith.constant 0 : index
    %c0_2 = arith.constant 0 : index
    %1 = vector.load %arg3[%c0_1, %c0_2] : memref<16x128xf32, #tpu.memory_space<vmem>>, vector<16x128xf32>
    %c0_3 = arith.constant 0 : index
    %c0_4 = arith.constant 0 : index
    %c0_5 = arith.constant 0 : index
    %c0_6 = arith.constant 0 : index
    %2 = vector.load %arg2[%c0_3, %c0_4, %c0_5, %c0_6] : memref<1x1x16x16xf32, #tpu.memory_space<vmem>>, vector<1x1x16x16xf32>
    %3 = vector.shape_cast %2 : vector<1x1x16x16xf32> to vector<16x16xf32>
    %cst = arith.constant dense<0.000000e+00> : vector<32x16xf32>
    %4 = tpu.matmul %0, %3, %cst {dimension_numbers = #tpu.dot_dimension_numbers<[1], [0], [0], [1], [0, 0, 1, 1], [], []>} : vector<32x16xf32>, vector<16x16xf32>, vector<32x16xf32> -> vector<32x16xf32>
    %cst_7 = arith.constant dense<0.000000e+00> : vector<32x128xf32>
    %5 = tpu.matmul %4, %1, %cst_7 {dimension_numbers = #tpu.dot_dimension_numbers<[1], [0], [0], [1], [0, 0, 1, 1], [], []>} : vector<32x16xf32>, vector<16x128xf32>, vector<32x128xf32> -> vector<32x128xf32>
    %c0_8 = arith.constant 0 : index
    %c0_9 = arith.constant 0 : index
    %c0_10 = arith.constant 0 : index
    %c0_11 = arith.constant 0 : index
    %6 = vector.load %arg4[%c0_8, %c0_9, %c0_10, %c0_11] : memref<1x1x32x128xf32, #tpu.memory_space<vmem>>, vector<1x1x32x128xf32>
    %7 = vector.shape_cast %6 : vector<1x1x32x128xf32> to vector<32x128xf32>
    %8 = vector.shape_cast %5 : vector<32x128xf32> to vector<1x1x32x128xf32>
    tpu.vector_store %arg4[%c0_8, %c0_9, %c0_10, %c0_11], %8 {strides = array<i32>} : memref<1x1x32x128xf32, #tpu.memory_space<vmem>>, vector<1x1x32x128xf32>,
    return
  }
  func.func @transform_0(%arg0: i32) -> (i32, i32) {
    %c0_i32 = arith.constant 0 : i32
    %c0_i32_0 = arith.constant 0 : i32
    %c0_i32_1 = arith.constant 0 : i32
    return %c0_i32, %c0_i32_0 : i32, i32
  }
  func.func @transform_1(%arg0: i32) -> (i32, i32, i32, i32) {
    %c0_i32 = arith.constant 0 : i32
    %c0_i32_0 = arith.constant 0 : i32
    %c0_i32_1 = arith.constant 0 : i32
    %c0_i32_2 = arith.constant 0 : i32
    return %arg0, %c0_i32, %c0_i32_0, %c0_i32_1 : i32, i32, i32, i32
  }
  func.func @transform_2(%arg0: i32) -> (i32, i32) {
    %c0_i32 = arith.constant 0 : i32
    %c0_i32_0 = arith.constant 0 : i32
    %c0_i32_1 = arith.constant 0 : i32
    return %c0_i32, %c0_i32_0 : i32, i32
  }
  func.func @transform_3(%arg0: i32) -> (i32, i32, i32, i32) {
    %c0_i32 = arith.constant 0 : i32
    %c0_i32_0 = arith.constant 0 : i32
    %c0_i32_1 = arith.constant 0 : i32
    %c0_i32_2 = arith.constant 0 : i32
    return %arg0, %c0_i32, %c0_i32_0, %c0_i32_1 : i32, i32, i32, i32
  }
}

</mosaic_0001>

<llo_original>
// kernel: tpu_custom_call.1
$region0: #{tpu_custom_call.1}
  #allocation0 [shape = 'u32[]', space=smem, size = 0x4, offset = 0x4, fixed_abs, tag = 'smem constant byte address 0x4 - core index']
  #allocation1 [shape = 'u32[144,128]{1,0:T(1,128)}', space=vmem, size = 0x12000, scoped, tag = 'internal scratch']
  %s0 = inlined_call_operand.vmem [shape: f32[32,16], index: 0, kind: input, shape index: {}]
  %s1 = inlined_call_operand.vmem [shape: f32[2,1,16,16], index: 1, kind: input, shape index: {}]
  %s2 = inlined_call_operand.vmem [shape: f32[16,128], index: 2, kind: input, shape index: {}]
  %s3 = inlined_call_operand.hbm [shape: f32[2,1,32,128], index: 3, kind: output, shape index: {}]
  %s4 = sld [smem:[#allocation0]]
  $region45: #{tpu_custom_call.1} parent=0
    _
  %s6 = ssub.s32 1, %s4
  %s7 = scalar_select 0, %s6, %s4
  $region1: #{tpu_custom_call.1} parent=0
    #allocation2 [shape = 'u8[32768]{0}', space=vmem, size = 0x8000, scoped, tag = 'output window, operand 0']
    #allocation3 [shape = 's32[2]{0}', space=sflag, size = 0x8, scoped, tag = 'scoped memory for tpu_custom_call.1']
    %8 = vsyncpa [#allocation3], 0
    %s9 = scalar_lea.sflag [#allocation3], 1
    %10 = vsyncpa %s9, 0
    loop: start=0, step=1, limit=4
    $region2: #{tpu_custom_call.1} parent=1 // loop_pre_header
      _
    $region3: #{tpu_custom_call.1} parent=1 // loop_header
      %s12 = sphi 0, %s16
      %p13 = scmp.ge.s32.totalorder %s12, 4
      %s20 = sphi 0, %s20
      %s22 = sphi 0, %s20
      %s23 = sphi 0, %s22
      %s37 = sphi 0, %s23
      %s43 = sphi 0, %s45
      %s46 = sphi 0, %s43
      %s47 = sphi 0, %s46
      %s63 = sphi 0, %s47
      %s67 = sphi 0, %s67
      %s69 = sphi 0, %s67
      %s70 = sphi 0, %s69
      %s84 = sphi 0, %s70
      %s90 = sphi 0, %s92
      %s93 = sphi 0, %s90
      %s94 = sphi 0, %s93
      %s110 = sphi 0, %s94
    $region4: #{tpu_custom_call.1} parent=1 // loop_header_branch
      %15 = sbr.rel (%p13) target = $region8
    $region5: #{tpu_custom_call.1} parent=1 // loop_body
      %s17 = ssub.s32 %s12, 1
      %s18 = ssub.s32 %s12, 2
      %s19 = sadd.s32 %s12, 1
      %s21 = sadd.s32 %s20, 1
      %p24 = scmp.eq.s32.totalorder %s12, 1
      %p25 = scmp.ne.s32.totalorder %s20, %s22
      %p26 = scmp.eq.s32.totalorder %s12, 0
      %p27 = por %p25, %p26
      %p28 = scmp.ne.s32.totalorder %s20, %s22
      %p29 = scmp.eq.s32.totalorder %s17, 1
      %p30 = por %p28, %p29
      %p31 = scmp.ne.s32.totalorder %s22, %s23
      %p32 = scmp.eq.s32.totalorder %s17, 0
      %p33 = por %p31, %p32
      %p34 = scmp.ne.s32.totalorder %s22, %s23
      %p35 = scmp.eq.s32.totalorder %s18, 1
      %p36 = por %p34, %p35
      %p38 = scmp.ne.s32.totalorder %s23, %s37
      %p39 = scmp.eq.s32.totalorder %s18, 0
      %p40 = por %p38, %p39
      %s41 = ssub.s32 %s12, %s19
      %p42 = scmp.eq.s32.totalorder %s41, 0
      %s44 = sadd.s32 %s43, 1
      %s45 = scalar_select %p42, %s43, %s44
      %p48 = pneg %p42
      %p49 = scmp.eq.s32.totalorder %s12, 1
      %p50 = por %p48, %p49
      %p51 = scmp.ne.s32.totalorder %s43, %s46
      %p52 = scmp.eq.s32.totalorder %s12, 0
      %p53 = por %p51, %p52
      %p54 = scmp.ne.s32.totalorder %s43, %s46
      %p55 = scmp.eq.s32.totalorder %s17, 1
      %p56 = por %p54, %p55
      %p57 = scmp.ne.s32.totalorder %s46, %s47
      %p58 = scmp.eq.s32.totalorder %s17, 0
      %p59 = por %p57, %p58
      %p60 = scmp.ne.s32.totalorder %s46, %s47
      %p61 = scmp.eq.s32.totalorder %s18, 1
      %p62 = por %p60, %p61
      %p64 = scmp.ne.s32.totalorder %s47, %s63
      %p65 = scmp.eq.s32.totalorder %s18, 0
      %p66 = por %p64, %p65
      %s68 = sadd.s32 %s67, 1
      %p71 = scmp.eq.s32.totalorder %s12, 1
      %p72 = scmp.ne.s32.totalorder %s67, %s69
      %p73 = scmp.eq.s32.totalorder %s12, 0
      %p74 = por %p72, %p73
      %p75 = scmp.ne.s32.totalorder %s67, %s69
      %p76 = scmp.eq.s32.totalorder %s17, 1
      %p77 = por %p75, %p76
      %p78 = scmp.ne.s32.totalorder %s69, %s70
      %p79 = scmp.eq.s32.totalorder %s17, 0
      %p80 = por %p78, %p79
      %p81 = scmp.ne.s32.totalorder %s69, %s70
      %p82 = scmp.eq.s32.totalorder %s18, 1
      %p83 = por %p81, %p82
      %p85 = scmp.ne.s32.totalorder %s70, %s84
      %p86 = scmp.eq.s32.totalorder %s18, 0
      %p87 = por %p85, %p86
      %s88 = ssub.s32 %s12, %s19
      %p89 = scmp.eq.s32.totalorder %s88, 0
      %s91 = sadd.s32 %s90, 1
      %s92 = scalar_select %p89, %s90, %s91
      %p95 = pneg %p89
      %p96 = scmp.eq.s32.totalorder %s12, 1
      %p97 = por %p95, %p96
      %p98 = scmp.ne.s32.totalorder %s90, %s93
      %p99 = scmp.eq.s32.totalorder %s12, 0
      %p100 = por %p98, %p99
      %p101 = scmp.ne.s32.totalorder %s90, %s93
      %p102 = scmp.eq.s32.totalorder %s17, 1
      %p103 = por %p101, %p102
      %p104 = scmp.ne.s32.totalorder %s93, %s94
      %p105 = scmp.eq.s32.totalorder %s17, 0
      %p106 = por %p104, %p105
      %p107 = scmp.ne.s32.totalorder %s93, %s94
      %p108 = scmp.eq.s32.totalorder %s18, 1
      %p109 = por %p107, %p108
      %p111 = scmp.ne.s32.totalorder %s94, %s110
      %p112 = scmp.eq.s32.totalorder %s18, 0
      %p113 = por %p111, %p112
      %p114 = scmp.le.s32.totalorder 1, %s12
      %p115 = scmp.lt.s32.totalorder %s12, 3
      %p116 = pnand %p114, %p115
      %p117 = pneg %p116
      // Predicated region
      $region9: #{tpu_custom_call.1} parent=5 // pred_check
        _
      $region10: #{tpu_custom_call.1} parent=5 // pred_check_branch
        %119 = sbr.rel (%p116) target = $region12
      $region11: #{tpu_custom_call.1} parent=5 // pred_region
        %s120 = ssub.s32 %s12, 1
        // Predicated region
        $region13: #{tpu_custom_call.1} parent=11 // pred_check
          %p121 = pneg %p33
        $region14: #{tpu_custom_call.1} parent=11 // pred_check_branch
          %123 = sbr.rel (%p121) target = $region16
        $region15: #{tpu_custom_call.1} parent=11 // pred_region
          _
        $region16: #{tpu_custom_call.1} parent=11 // pred_fallthru
          _
        // Predicated region
        $region17: #{tpu_custom_call.1} parent=11 // pred_check
          %p124 = pneg %p80
        $region18: #{tpu_custom_call.1} parent=11 // pred_check_branch
          %126 = sbr.rel (%p124) target = $region20
        $region19: #{tpu_custom_call.1} parent=11 // pred_region
          _
        $region20: #{tpu_custom_call.1} parent=11 // pred_fallthru
          _
      $region12: #{tpu_custom_call.1} parent=5 // pred_fallthru
        _
      %p127 = scmp.lt.s32.totalorder %s12, 2
      // Predicated region
      $region21: #{tpu_custom_call.1} parent=5 // pred_check
        %p128 = pneg %p127
      $region22: #{tpu_custom_call.1} parent=5 // pred_check_branch
        %130 = sbr.rel (%p128) target = $region24
      $region23: #{tpu_custom_call.1} parent=5 // pred_region
        // Predicated region
        $region25: #{tpu_custom_call.1} parent=23 // pred_check
          %p131 = pneg %p53
        $region26: #{tpu_custom_call.1} parent=23 // pred_check_branch
          %133 = sbr.rel (%p131) target = $region28
        $region27: #{tpu_custom_call.1} parent=23 // pred_region
          %p134 = scmp.lt.s32.totalorder %s12, 1
          %s135 = scalar_select %p134, %s12, 1
          %s136 = smul.addr %s135, 2
          %s137 = smul.addr %s136, 8
          %s138 = scalar_lea.vmem %s1, %s137
        $region28: #{tpu_custom_call.1} parent=23 // pred_fallthru
          _
      $region24: #{tpu_custom_call.1} parent=5 // pred_fallthru
        _
      %p139 = scmp.le.s32.totalorder 1, %s12
      %p140 = scmp.lt.s32.totalorder %s12, 3
      %p141 = pnand %p139, %p140
      %p142 = pneg %p141
      // Predicated region
      $region29: #{tpu_custom_call.1} parent=5 // pred_check
        _
      $region30: #{tpu_custom_call.1} parent=5 // pred_check_branch
        %144 = sbr.rel (%p141) target = $region32
      $region31: #{tpu_custom_call.1} parent=5 // pred_region
        %s145 = ssub.s32 %s12, 1
        %p146 = pneg %p33
        %p147 = pneg %p30
        %p148 = scmp.lt.s32.totalorder %s17, 1
        %s149 = scalar_select %p148, %s17, 1
        %s150 = smul.addr %s149, 2
        %s151 = smul.addr %s150, 8
        %s152 = scalar_lea.vmem %s1, %s151
        %p153 = pneg %p59
        %p154 = pneg %p56
        %p155 = pneg %p80
        %p156 = pneg %p77
        %p157 = pneg %p106
        %p158 = pneg %p103
        %s159 = sand.u32 %s93, 1
        %s160 = scalar_lea.sflag [#allocation3], %s159
        %s161 = sand.u32 %s93, 1
        %s162 = smul.addr %s161, 32
        %s163 = scalar_lea.vmem [#allocation2], %s162
        %p164 = scmp.lt.s32.totalorder %s17, 1
        %s165 = scalar_select %p164, %s17, 1
        %s166 = smul.addr %s165, 2
        %s167 = smul.addr %s166, 8
        %s168 = scalar_lea.vmem %s1, %s167
        %v169 = vld [vmem:[%s0] sm:$0xff]
        %v170 = vld [vmem:[%s0 + $0x8] sm:$0xff]
        %v171 = vld [vmem:[%s0 + $0x10] sm:$0xff]
        %v172 = vld [vmem:[%s0 + $0x18] sm:$0xff]
        %v173 = vld [vmem:[%s2] sm:$0xff]
        %v174 = vld [vmem:[%s2 + $0x8] sm:$0xff]
        %v175 = vld [vmem:[%s168] sm:$0xff]
        %v176 = vld [vmem:[%s168 + $0x8] sm:$0xff]
        %vm177 = vcmask 130048
        %v179 = vsel %vm177, %v169, 0
        %v182 = vsel %vm177, %v170, 0
        %v185 = vsel %vm177, %v171, 0
        %v188 = vsel %vm177, %v172, 0
        %190 = vmatprep.subr.mxu0 0.0
        %191 = vmatpush1.msra.mxu0 %v175
        %192 = vmatprep.subr.mxu0 0.0
        %193 = vmatpush1.msra.mxu0 %v176
        %194 = vmatprep.subr.mxu0 0.0
        %195 = vmatpush1.msra.mxu0 0.0
        %196 = vmatprep.subr.mxu0 0.0
        %197 = vmatpush1.msra.mxu0 0.0
        %198 = vmatprep.subr.mxu0 0.0
        %199 = vmatpush1.msra.mxu0 0.0
        %200 = vmatprep.subr.mxu0 0.0
        %201 = vmatpush1.msra.mxu0 0.0
        %202 = vmatprep.subr.mxu0 0.0
        %203 = vmatpush1.msra.mxu0 0.0
        %204 = vmatprep.subr.mxu0 0.0
        %205 = vmatpush1.msra.mxu0 0.0
        %206 = vmatprep.subr.mxu0 0.0
        %207 = vmatpush1.msra.mxu0 0.0
        %208 = vmatprep.subr.mxu0 0.0
        %209 = vmatpush1.msra.mxu0 0.0
        %210 = vmatprep.subr.mxu0 0.0
        %211 = vmatpush1.msra.mxu0 0.0
        %212 = vmatprep.subr.mxu0 0.0
        %213 = vmatpush1.msra.mxu0 0.0
        %214 = vmatprep.subr.mxu0 0.0
        %215 = vmatpush1.msra.mxu0 0.0
        %216 = vmatprep.subr.mxu0 0.0
        %217 = vmatpush1.msra.mxu0 0.0
        %218 = vmatprep.subr.mxu0 0.0
        %219 = vmatpush1.msra.mxu0 0.0
        %220 = vmatprep.subr.mxu0 0.0
        %221 = vmatpush1.msra.mxu0 0.0
        %222 = vmatprep.subr.mxu0 0.0
        %223 = vmatpush1.msra.mxu0 0.0
        %224 = vmatprep.subr.mxu0 0.0
        %225 = vmatpush1.msra.mxu0 0.0
        %226 = vmatprep.subr.mxu0 0.0
        %227 = vmatpush1.msra.mxu0 0.0
        %228 = vmatprep.subr.mxu0 0.0
        %229 = vmatpush1.msra.mxu0 0.0
        %230 = vmatprep.subr.mxu0 0.0
        %231 = vmatpush1.msra.mxu0 0.0
        %232 = vmatprep.subr.mxu0 0.0
        %233 = vmatpush1.msra.mxu0 0.0
        %234 = vmatprep.subr.mxu0 0.0
        %235 = vmatpush1.msra.mxu0 0.0
        %236 = vmatprep.subr.mxu0 0.0
        %237 = vmatpush1.msra.mxu0 0.0
        %238 = vmatprep.subr.mxu0 0.0
        %239 = vmatpush1.msra.mxu0 0.0
        %240 = vmatprep.subr.mxu0 0.0
        %241 = vmatpush1.msra.mxu0 0.0
        %242 = vmatprep.subr.mxu0 0.0
        %243 = vmatpush1.msra.mxu0 0.0
        %244 = vmatprep.subr.mxu0 0.0
        %245 = vmatpush1.msra.mxu0 0.0
        %246 = vmatprep.subr.mxu0 0.0
        %247 = vmatpush1.msra.mxu0 0.0
        %248 = vmatprep.subr.mxu0 0.0
        %249 = vmatpush1.msra.mxu0 0.0
        %250 = vmatprep.subr.mxu0 0.0
        %251 = vmatpush1.msra.mxu0 0.0
        %252 = vmatprep.subr.mxu0 0.0
        %253 = vmatpush1.msra.mxu0 0.0
        %254 = vmatprep.mubr.f32.mxu0 0.0
        %255 = vmatmul.mubr.f32.gmra.mrb[0].mxu0 %v179
        %v256 = vpop.f32.mrb[0].mxu0
        %v257 = vadd.f32 0.0, %v256
        %v258 = vpop.f32.mrb[0].mxu0
        %259 = vmatprep.mubr.f32.mxu0 0.0
        %260 = vmatmul.mubr.f32.gmra.mrb[0].mxu0 %v182
        %v261 = vpop.f32.mrb[0].mxu0
        %v262 = vadd.f32 0.0, %v261
        %v263 = vpop.f32.mrb[0].mxu0
        %264 = vmatprep.mubr.f32.mxu0 0.0
        %265 = vmatmul.mubr.f32.gmra.mrb[0].mxu0 %v185
        %v266 = vpop.f32.mrb[0].mxu0
        %v267 = vadd.f32 0.0, %v266
        %v268 = vpop.f32.mrb[0].mxu0
        %269 = vmatprep.mubr.f32.mxu0 0.0
        %270 = vmatmul.mubr.f32.gmra.mrb[0].mxu0 %v188
        %v271 = vpop.f32.mrb[0].mxu0
        %v272 = vadd.f32 0.0, %v271
        %v273 = vpop.f32.mrb[0].mxu0
        %274 = vdwg.mxu0
        %v276 = vsel %vm177, %v257, 0
        %v279 = vsel %vm177, %v262, 0
        %v282 = vsel %vm177, %v267, 0
        %v285 = vsel %vm177, %v272, 0
        %287 = vmatprep.subr.mxu0 0.0
        %288 = vmatpush1.msra.mxu0 %v173
        %289 = vmatprep.subr.mxu0 0.0
        %290 = vmatpush1.msra.mxu0 %v174
        %291 = vmatprep.subr.mxu0 0.0
        %292 = vmatpush1.msra.mxu0 0.0
        %293 = vmatprep.subr.mxu0 0.0
        %294 = vmatpush1.msra.mxu0 0.0
        %295 = vmatprep.subr.mxu0 0.0
        %296 = vmatpush1.msra.mxu0 0.0
        %297 = vmatprep.subr.mxu0 0.0
        %298 = vmatpush1.msra.mxu0 0.0
        %299 = vmatprep.subr.mxu0 0.0
        %300 = vmatpush1.msra.mxu0 0.0
        %301 = vmatprep.subr.mxu0 0.0
        %302 = vmatpush1.msra.mxu0 0.0
        %303 = vmatprep.subr.mxu0 0.0
        %304 = vmatpush1.msra.mxu0 0.0
        %305 = vmatprep.subr.mxu0 0.0
        %306 = vmatpush1.msra.mxu0 0.0
        %307 = vmatprep.subr.mxu0 0.0
        %308 = vmatpush1.msra.mxu0 0.0
        %309 = vmatprep.subr.mxu0 0.0
        %310 = vmatpush1.msra.mxu0 0.0
        %311 = vmatprep.subr.mxu0 0.0
        %312 = vmatpush1.msra.mxu0 0.0
        %313 = vmatprep.subr.mxu0 0.0
        %314 = vmatpush1.msra.mxu0 0.0
        %315 = vmatprep.subr.mxu0 0.0
        %316 = vmatpush1.msra.mxu0 0.0
        %317 = vmatprep.subr.mxu0 0.0
        %318 = vmatpush1.msra.mxu0 0.0
        %319 = vmatprep.subr.mxu0 0.0
        %320 = vmatpush1.msra.mxu0 0.0
        %321 = vmatprep.subr.mxu0 0.0
        %322 = vmatpush1.msra.mxu0 0.0
        %323 = vmatprep.subr.mxu0 0.0
        %324 = vmatpush1.msra.mxu0 0.0
        %325 = vmatprep.subr.mxu0 0.0
        %326 = vmatpush1.msra.mxu0 0.0
        %327 = vmatprep.subr.mxu0 0.0
        %328 = vmatpush1.msra.mxu0 0.0
        %329 = vmatprep.subr.mxu0 0.0
        %330 = vmatpush1.msra.mxu0 0.0
        %331 = vmatprep.subr.mxu0 0.0
        %332 = vmatpush1.msra.mxu0 0.0
        %333 = vmatprep.subr.mxu0 0.0
        %334 = vmatpush1.msra.mxu0 0.0
        %335 = vmatprep.subr.mxu0 0.0
        %336 = vmatpush1.msra.mxu0 0.0
        %337 = vmatprep.subr.mxu0 0.0
        %338 = vmatpush1.msra.mxu0 0.0
        %339 = vmatprep.subr.mxu0 0.0
        %340 = vmatpush1.msra.mxu0 0.0
        %341 = vmatprep.subr.mxu0 0.0
        %342 = vmatpush1.msra.mxu0 0.0
        %343 = vmatprep.subr.mxu0 0.0
        %344 = vmatpush1.msra.mxu0 0.0
        %345 = vmatprep.subr.mxu0 0.0
        %346 = vmatpush1.msra.mxu0 0.0
        %347 = vmatprep.subr.mxu0 0.0
        %348 = vmatpush1.msra.mxu0 0.0
        %349 = vmatprep.subr.mxu0 0.0
        %350 = vmatpush1.msra.mxu0 0.0
        %351 = vmatprep.mubr.f32.mxu0 0.0
        %352 = vmatmul.mubr.f32.gmra.mrb[0].mxu0 %v276
        %v353 = vpop.f32.mrb[0].mxu0
        %v354 = vadd.f32 0.0, %v353
        %v355 = vpop.f32.mrb[0].mxu0
        %356 = vmatprep.mubr.f32.mxu0 0.0
        %357 = vmatmul.mubr.f32.gmra.mrb[0].mxu0 %v279
        %v358 = vpop.f32.mrb[0].mxu0
        %v359 = vadd.f32 0.0, %v358
        %v360 = vpop.f32.mrb[0].mxu0
        %361 = vmatprep.mubr.f32.mxu0 0.0
        %362 = vmatmul.mubr.f32.gmra.mrb[0].mxu0 %v282
        %v363 = vpop.f32.mrb[0].mxu0
        %v364 = vadd.f32 0.0, %v363
        %v365 = vpop.f32.mrb[0].mxu0
        %366 = vmatprep.mubr.f32.mxu0 0.0
        %367 = vmatmul.mubr.f32.gmra.mrb[0].mxu0 %v285
        %v368 = vpop.f32.mrb[0].mxu0
        %v369 = vadd.f32 0.0, %v368
        %v370 = vpop.f32.mrb[0].mxu0
        %371 = vdwg.mxu0
        %372 = vst [vmem:[%s163] sm:$0xff] %v354
        %373 = vst [vmem:[%s163 + $0x8] sm:$0xff] %v359
        %374 = vst [vmem:[%s163 + $0x10] sm:$0xff] %v364
        %375 = vst [vmem:[%s163 + $0x18] sm:$0xff] %v369
        %s376 = sand.u32 %s93, 1
        %s377 = scalar_lea.sflag [#allocation3], %s376
        %s378 = sand.u32 %s93, 1
        %s379 = smul.addr %s378, 32
        %s380 = scalar_lea.vmem [#allocation2], %s379
        // Predicated region
        $region33: #{tpu_custom_call.1} parent=31 // pred_check
          %p381 = pneg %p103
        $region34: #{tpu_custom_call.1} parent=31 // pred_check_branch
          %383 = sbr.rel (%p381) target = $region36
        $region35: #{tpu_custom_call.1} parent=31 // pred_region
          %s385 = ssub.s32 512, 512
          %386 = vsyncadd %s377, %s385
          %s387 = smul.addr %s17, 4
          %s388 = smul.addr %s387, 128
          %s389 = scalar_lea.hbm %s3, %s388
          %s390 = sshll.u32 %s380, 4
          %s391 = int_to_ptr.vmem [resolvable:$true] %s390
          %396 = dma.vmem_to_hbm [thread:$0]  %s391, 512, %s389, %s377, 128, 128, 8
        $region36: #{tpu_custom_call.1} parent=31 // pred_fallthru
          _
      $region32: #{tpu_custom_call.1} parent=5 // pred_fallthru
        _
      %p397 = scmp.le.s32.totalorder 2, %s12
      // Predicated region
      $region37: #{tpu_custom_call.1} parent=5 // pred_check
        %p398 = pneg %p397
      $region38: #{tpu_custom_call.1} parent=5 // pred_check_branch
        %400 = sbr.rel (%p398) target = $region40
      $region39: #{tpu_custom_call.1} parent=5 // pred_region
        %s401 = ssub.s32 %s12, 2
        // Predicated region
        $region41: #{tpu_custom_call.1} parent=39 // pred_check
          %p402 = pneg %p109
        $region42: #{tpu_custom_call.1} parent=39 // pred_check_branch
          %404 = sbr.rel (%p402) target = $region44
        $region43: #{tpu_custom_call.1} parent=39 // pred_region
          %s405 = sand.u32 %s94, 1
          %s406 = scalar_lea.sflag [#allocation3], %s405
          %s407 = sand.u32 %s94, 1
          %s408 = smul.addr %s407, 32
          %s409 = scalar_lea.vmem [#allocation2], %s408
          %410 = dma.done %s406, 512
        $region44: #{tpu_custom_call.1} parent=39 // pred_fallthru
          _
      $region40: #{tpu_custom_call.1} parent=5 // pred_fallthru
        _
    $region6: #{tpu_custom_call.1} parent=1 // loop_footer
      %s16 = sadd.s32 1, %s12
    $region7: #{tpu_custom_call.1} parent=1 // loop_footer_branch
      %11 = sbr.rel target = $region3
    $region8: #{tpu_custom_call.1} parent=1 // loop_exit
      _
    %411 = vsyncpa [#allocation3], 1
    %s412 = scalar_lea.sflag [#allocation3], 1
    %413 = vsyncpa %s412, 1

</llo_original>
